<compile_context>
chip_gen: v5e
topology: v5e:2x2
jax: 0.10.0
libtpu: 0.0.40
codegen_flags: <defaults>
</compile_context>

<pallas_src>
import jax
import jax.numpy as jnp
from jax import lax
from jax.experimental import pallas as pl
from jax.experimental.pallas import tpu as pltpu


def feat_classifier_kernel(x_ref, w_ref, o_ref):
    """x_ref: (TB, Dp) input tile, w_ref: (Dp, Cp) bf16 normalized weight -> o_ref (TB, Cp) f32."""
    x = x_ref[...].astype(jnp.bfloat16)          # cast in VMEM, native-dtype HBM traffic for x
    o_ref[...] = jnp.dot(x, w_ref[...],
                         preferred_element_type=jnp.float32).astype(o_ref.dtype)


def _round_up(n, m):
    return pl.cdiv(n, m) * m


def feat_classifier_forward(x, v, g=None, *, use_shot=True, batch_tile=512):
    """x: (B, D) float.  v: (C, D) PyTorch Linear weight layout (out, in).
    g: (C,) weight_norm gains (ignored when use_shot=False).  Returns (B, C) f32 logits."""
    B, D = x.shape
    C = v.shape[0]

    # ---- one-time weight preparation (hoisted weight_norm, f32, then bf16 + (K, N) layout) ----
    v32 = v.astype(jnp.float32)
    if use_shot:
        nrm2 = jnp.sum(v32 * v32, axis=1, keepdims=True)                 # (C, 1), f32 norm of f32 v
        if g is None:
            g32 = jnp.sqrt(nrm2)          # PyTorch weight_norm init: g = ||original weight||
        else:
            g32 = g.astype(jnp.float32).reshape(C, 1)
        w32 = v32 * (g32 * lax.rsqrt(nrm2))                              # W = g * v / ||v||
    else:
        w32 = v32

    C_pad = _round_up(C, 128)            # lane-dense output columns
    D_pad = _round_up(D, 128)            # lane-dense contraction dim
    # (K, N) weight for a standard MXU RHS; zero-pad so padded logit columns are exactly 0.
    w_kn = jnp.pad(w32.T, ((0, D_pad - D), (0, C_pad - C))).astype(jnp.bfloat16)

    # ---- batch tiling: multiple of 16, >= 2 grid steps for large B (v7x megacore) ----
    TB = min(batch_tile, _round_up(pl.cdiv(B, 2), 16))
    if TB >= B:
        TB = B                            # single block == full batch (no row padding needed)
    B_pad = _round_up(B, TB)

    if (B_pad, D_pad) != (B, D):
        x_in = jnp.pad(x, ((0, B_pad - B), (0, D_pad - D)))
    else:
        x_in = x                          # default D=256: no pad, no cast, no extra HBM pass

    x_itemsize = jnp.dtype(x_in.dtype).itemsize
    vmem_need = (2 * TB * D_pad * x_itemsize      # double-buffered x tiles
                 + 2 * TB * C_pad * 4             # double-buffered f32 out tiles
                 + 2 * D_pad * C_pad * 2)         # weight (assume double-buffered)
    vmem_limit = int(min(max(2 * vmem_need, 16 * 1024 * 1024), 32 * 1024 * 1024))

    cost = pl.CostEstimate(
        flops=2 * B_pad * C_pad * D_pad,
        transcendentals=0,
        bytes_accessed=int(x_in.size * x_itemsize + w_kn.size * 2 + B_pad * C_pad * 4),
    )

    out = pl.pallas_call(
        feat_classifier_kernel,
        out_shape=jax.ShapeDtypeStruct((B_pad, C_pad), jnp.float32),
        grid=(B_pad // TB,),
        in_specs=[
            pl.BlockSpec((TB, D_pad), lambda i: (i, 0)),      # x batch tile
            pl.BlockSpec((D_pad, C_pad), lambda i: (0, 0)),   # normalized weight, resident
        ],
        out_specs=pl.BlockSpec((TB, C_pad), lambda i: (i, 0)),
        compiler_params=pltpu.CompilerParams(
            dimension_semantics=("parallel",),                # rows independent -> megacore-safe
            vmem_limit_bytes=vmem_limit),
        cost_estimate=cost,
    )(x_in, w_kn)

    if (B_pad, C_pad) == (B, C):
        return out                         # no extra HBM pass when nothing was padded
    return out[:B, :C]


def _reference(x, v, g, use_shot=True):
    if use_shot:
        w = g[:, None] * v / jnp.sqrt(jnp.sum(v * v, axis=1, keepdims=True))
    else:
        w = v
    return x @ w.T


if __name__ == "__main__":
    # Small shapes consistent with the module (bottleneck_dim=256 default,
    # office-home-like class count).
    BOTTLENECK_DIM, CLASS_NUM = 256, 65

    key = jax.random.PRNGKey(0)
    kx, kv, kg, kx2 = jax.random.split(key, 4)

    # nn.Linear(bias=False) with xavier_normal_ weight (init_weights); under
    # weight_norm, v is the direction parameter and g the per-row gain.
    xavier_std = (2.0 / (BOTTLENECK_DIM + CLASS_NUM)) ** 0.5
    v = xavier_std * jax.random.normal(kv, (CLASS_NUM, BOTTLENECK_DIM), jnp.float32)
    g = 0.5 + jnp.abs(jax.random.normal(kg, (CLASS_NUM,), jnp.float32))

    # --- small batch (single block, no padding of the batch axis) ---
    B = 8
    x = jax.random.normal(kx, (B, BOTTLENECK_DIM), dtype=jnp.float32)

    out = jax.block_until_ready(feat_classifier_forward(x, v, g, use_shot=True))
    assert out.shape == (B, CLASS_NUM)
    assert bool(jnp.all(jnp.isfinite(out)))
    ref = _reference(x, v, g, use_shot=True)
    err = float(jnp.max(jnp.abs(out - ref)))
    scl = float(jnp.max(jnp.abs(ref))) + 1e-6
    assert err <= 3e-2 * scl, f"use_shot=True mismatch: {err} (scale {scl})"

    out2 = jax.block_until_ready(feat_classifier_forward(x, v, g, use_shot=False))
    ref2 = _reference(x, v, g, use_shot=False)
    err2 = float(jnp.max(jnp.abs(out2 - ref2)))
    scl2 = float(jnp.max(jnp.abs(ref2))) + 1e-6
    assert err2 <= 3e-2 * scl2, f"use_shot=False mismatch: {err2} (scale {scl2})"

    # --- larger batch exercising the tiled / padded path (grid > 1) ---
    B2 = 40
    x2 = jax.random.normal(kx2, (B2, BOTTLENECK_DIM), dtype=jnp.float32)
    out3 = jax.block_until_ready(feat_classifier_forward(x2, v, g, use_shot=True))
    assert out3.shape == (B2, CLASS_NUM)
    ref3 = _reference(x2, v, g, use_shot=True)
    err3 = float(jnp.max(jnp.abs(out3 - ref3)))
    scl3 = float(jnp.max(jnp.abs(ref3))) + 1e-6
    assert err3 <= 3e-2 * scl3, f"tiled use_shot=True mismatch: {err3} (scale {scl3})"

    print("KERNEL_OK")
</pallas_src>

<mosaic_0001>
module attributes {stable_mosaic.version = 11 : i64} {
  func.func @feat_classifier_kernel(%arg0: i32, %arg1: memref<8x256xf32, #tpu.memory_space<vmem>>, %arg2: memref<256x128xbf16, #tpu.memory_space<vmem>>, %arg3: memref<8x128xf32, #tpu.memory_space<vmem>>) attributes {dimension_semantics = [#tpu.dimension_semantics<parallel>], iteration_bounds = array<i64: 1>, scalar_prefetch = 0 : i64, scratch_operands = 0 : i64, tpu.core_type = #tpu.core_type<tc>, window_params = [{transform_indices = @transform_0, window_bounds = array<i64: 8, 256>}, {pipeline_mode = #tpu.pipeline_mode<synchronous>, transform_indices = @transform_1, window_bounds = array<i64: 256, 128>}, {transform_indices = @transform_2, window_bounds = array<i64: 8, 128>}]} {
    %c0 = arith.constant 0 : index
    %c0_0 = arith.constant 0 : index
    %0 = vector.load %arg1[%c0, %c0_0] : memref<8x256xf32, #tpu.memory_space<vmem>>, vector<8x256xf32>
    %1 = arith.truncf %0 : vector<8x256xf32> to vector<8x256xbf16>
    %c0_1 = arith.constant 0 : index
    %c0_2 = arith.constant 0 : index
    %2 = vector.load %arg2[%c0_1, %c0_2] : memref<256x128xbf16, #tpu.memory_space<vmem>>, vector<256x128xbf16>
    %cst = arith.constant dense<0.000000e+00> : vector<8x128xf32>
    %3 = tpu.matmul %1, %2, %cst {dimension_numbers = #tpu.dot_dimension_numbers<[1], [0], [0], [1], [0, 0, 1, 1], [], []>} : vector<8x256xbf16>, vector<256x128xbf16>, vector<8x128xf32> -> vector<8x128xf32>
    %c0_3 = arith.constant 0 : index
    %c0_4 = arith.constant 0 : index
    %4 = vector.load %arg3[%c0_3, %c0_4] : memref<8x128xf32, #tpu.memory_space<vmem>>, vector<8x128xf32>
    tpu.vector_store %arg3[%c0_3, %c0_4], %3 {strides = array<i32>} : memref<8x128xf32, #tpu.memory_space<vmem>>, vector<8x128xf32>,
    return
  }
  func.func @transform_0(%arg0: i32) -> (i32, i32) {
    %c0_i32 = arith.constant 0 : i32
    %c0_i32_0 = arith.constant 0 : i32
    return %arg0, %c0_i32 : i32, i32
  }
  func.func @transform_1(%arg0: i32) -> (i32, i32) {
    %c0_i32 = arith.constant 0 : i32
    %c0_i32_0 = arith.constant 0 : i32
    %c0_i32_1 = arith.constant 0 : i32
    return %c0_i32, %c0_i32_0 : i32, i32
  }
  func.func @transform_2(%arg0: i32) -> (i32, i32) {
    %c0_i32 = arith.constant 0 : i32
    %c0_i32_0 = arith.constant 0 : i32
    return %arg0, %c0_i32 : i32, i32
  }
}

</mosaic_0001>

<llo_original>
// kernel: tpu_custom_call.1
$region0: #{tpu_custom_call.1}
  #allocation0 [shape = 'u32[]', space=smem, size = 0x4, offset = 0x4, fixed_abs, tag = 'smem constant byte address 0x4 - core index']
  #allocation1 [shape = 'u32[72,128]{1,0:T(1,128)}', space=vmem, size = 0x9000, scoped, tag = 'internal scratch']
  %s0 = inlined_call_operand.hbm [shape: f32[8,256], index: 0, kind: input, shape index: {}]
  %s1 = inlined_call_operand.hbm [shape: bf16[256,128], index: 1, kind: input, shape index: {}]
  %s2 = inlined_call_operand.hbm [shape: f32[8,128], index: 2, kind: output, shape index: {}]
  %s3 = sld [smem:[#allocation0]]
  $region26: #{tpu_custom_call.1} parent=0
    _
  %s5 = ssub.s32 1, %s3
  %s6 = scalar_select 0, %s5, %s3
  $region1: #{tpu_custom_call.1} parent=0
    #allocation2 [shape = 'u8[8192]{0}', space=vmem, size = 0x2000, scoped, tag = 'input window, operand 0, single buffered']
    #allocation3 [shape = 's32[1]{0}', space=sflag, size = 0x4, scoped, tag = 'scoped memory for tpu_custom_call.1']
    #allocation4 [shape = 's32[1]{0}', space=sflag, size = 0x4, scoped, tag = 'scoped memory for tpu_custom_call.1']
    #allocation5 [shape = 'u8[65536]{0}', space=vmem, size = 0x10000, scoped, tag = 'input window, operand 1, single buffered']
    #allocation6 [shape = 's32[1]{0}', space=sflag, size = 0x4, scoped, tag = 'scoped memory for tpu_custom_call.1']
    #allocation7 [shape = 'u8[4096]{0}', space=vmem, size = 0x1000, scoped, tag = 'output window, operand 0, single buffered']
    %7 = vsyncpa [#allocation3], 0
    %8 = vsyncpa [#allocation6], 0
    %9 = vsyncpa [#allocation4], 0
    // Predicated region
    $region2: #{tpu_custom_call.1} parent=1 // pred_check
      _
    $region3: #{tpu_custom_call.1} parent=1 // pred_check_branch
      %11 = sbr.rel (0) target = $region5
    $region4: #{tpu_custom_call.1} parent=1 // pred_region
      %13 = vsyncadd [#allocation3], 0
      %s15 = sshll.u32 %s0, 4
      %s16 = int_to_ptr.hbm [resolvable:$true] %s15
      %s17 = sshll.u32 [#allocation2], 4
      %s18 = int_to_ptr.vmem [resolvable:$true] %s17
      %20 = dma.hbm_to_vmem [thread:$0]  %s16, 256, %s18, [#allocation3]
    $region5: #{tpu_custom_call.1} parent=1 // pred_fallthru
      _
    // Predicated region
    $region6: #{tpu_custom_call.1} parent=1 // pred_check
      _
    $region7: #{tpu_custom_call.1} parent=1 // pred_check_branch
      %22 = sbr.rel (0) target = $region9
    $region8: #{tpu_custom_call.1} parent=1 // pred_region
      %24 = vsyncadd [#allocation6], 0
      %s25 = sshll.u32 %s1, 4
      %s26 = int_to_ptr.hbm [resolvable:$true] %s25
      %s27 = sshll.u32 [#allocation5], 4
      %s28 = int_to_ptr.vmem [resolvable:$true] %s27
      %33 = dma.hbm_to_vmem [thread:$0]  %s26, 2048, %s28, [#allocation6], 64, 64, 4
    $region9: #{tpu_custom_call.1} parent=1 // pred_fallthru
      _
    // Predicated region
    $region10: #{tpu_custom_call.1} parent=1 // pred_check
      _
    $region11: #{tpu_custom_call.1} parent=1 // pred_check_branch
      %35 = sbr.rel (0) target = $region13
    $region12: #{tpu_custom_call.1} parent=1 // pred_region
      %37 = dma.done [#allocation3], 256
    $region13: #{tpu_custom_call.1} parent=1 // pred_fallthru
      _
    // Predicated region
    $region14: #{tpu_custom_call.1} parent=1 // pred_check
      _
    $region15: #{tpu_custom_call.1} parent=1 // pred_check_branch
      %39 = sbr.rel (0) target = $region17
    $region16: #{tpu_custom_call.1} parent=1 // pred_region
      %41 = dma.done [#allocation6], 2048
    $region17: #{tpu_custom_call.1} parent=1 // pred_fallthru
      _
    %v42 = vld [vmem:[#allocation2] sm:$0xff]
    %v43 = vld [vmem:[#allocation2 + $0x8] sm:$0xff]
    %v44 = vpack.c.bf16 %v42, %v42
    %v45 = vpack.c.bf16 %v43, %v43
    %v46 = vld [vmem:[#allocation5] sm:$0xf]
    %v47 = vld [vmem:[#allocation5 + $0x4] sm:$0xf]
    %v48 = vld [vmem:[#allocation5 + $0x8] sm:$0xf]
    %v49 = vld [vmem:[#allocation5 + $0xc] sm:$0xf]
    %v50 = vld [vmem:[#allocation5 + $0x10] sm:$0xf]
    %v51 = vld [vmem:[#allocation5 + $0x14] sm:$0xf]
    %v52 = vld [vmem:[#allocation5 + $0x18] sm:$0xf]
    %v53 = vld [vmem:[#allocation5 + $0x1c] sm:$0xf]
    %v54 = vld [vmem:[#allocation5 + $0x20] sm:$0xf]
    %v55 = vld [vmem:[#allocation5 + $0x24] sm:$0xf]
    %v56 = vld [vmem:[#allocation5 + $0x28] sm:$0xf]
    %v57 = vld [vmem:[#allocation5 + $0x2c] sm:$0xf]
    %v58 = vld [vmem:[#allocation5 + $0x30] sm:$0xf]
    %v59 = vld [vmem:[#allocation5 + $0x34] sm:$0xf]
    %v60 = vld [vmem:[#allocation5 + $0x38] sm:$0xf]
    %v61 = vld [vmem:[#allocation5 + $0x3c] sm:$0xf]
    %v62 = vld [vmem:[#allocation5 + $0x40] sm:$0xf]
    %v63 = vld [vmem:[#allocation5 + $0x44] sm:$0xf]
    %v64 = vld [vmem:[#allocation5 + $0x48] sm:$0xf]
    %v65 = vld [vmem:[#allocation5 + $0x4c] sm:$0xf]
    %v66 = vld [vmem:[#allocation5 + $0x50] sm:$0xf]
    %v67 = vld [vmem:[#allocation5 + $0x54] sm:$0xf]
    %v68 = vld [vmem:[#allocation5 + $0x58] sm:$0xf]
    %v69 = vld [vmem:[#allocation5 + $0x5c] sm:$0xf]
    %v70 = vld [vmem:[#allocation5 + $0x60] sm:$0xf]
    %v71 = vld [vmem:[#allocation5 + $0x64] sm:$0xf]
    %v72 = vld [vmem:[#allocation5 + $0x68] sm:$0xf]
    %v73 = vld [vmem:[#allocation5 + $0x6c] sm:$0xf]
    %v74 = vld [vmem:[#allocation5 + $0x70] sm:$0xf]
    %v75 = vld [vmem:[#allocation5 + $0x74] sm:$0xf]
    %v76 = vld [vmem:[#allocation5 + $0x78] sm:$0xf]
    %v77 = vld [vmem:[#allocation5 + $0x7c] sm:$0xf]
    %v110 = vunpack.c.l.b16 %v46
    %v111 = vunpack.c.l.b16 %v47
    %v112 = vunpack.c.l.b16 %v48
    %v113 = vunpack.c.l.b16 %v49
    %v114 = vunpack.c.l.b16 %v50
    %v115 = vunpack.c.l.b16 %v51
    %v116 = vunpack.c.l.b16 %v52
    %v117 = vunpack.c.l.b16 %v53
    %v118 = vunpack.c.l.b16 %v54
    %v119 = vunpack.c.l.b16 %v55
    %v120 = vunpack.c.l.b16 %v56
    %v121 = vunpack.c.l.b16 %v57
    %v122 = vunpack.c.l.b16 %v58
    %v123 = vunpack.c.l.b16 %v59
    %v124 = vunpack.c.l.b16 %v60
    %v125 = vunpack.c.l.b16 %v61
    %v126 = vunpack.c.l.b16 %v62
    %v127 = vunpack.c.l.b16 %v63
    %v128 = vunpack.c.l.b16 %v64
    %v129 = vunpack.c.l.b16 %v65
    %v130 = vunpack.c.l.b16 %v66
    %v131 = vunpack.c.l.b16 %v67
    %v132 = vunpack.c.l.b16 %v68
    %v133 = vunpack.c.l.b16 %v69
    %v134 = vunpack.c.l.b16 %v70
    %v135 = vunpack.c.l.b16 %v71
    %v136 = vunpack.c.l.b16 %v72
    %v137 = vunpack.c.l.b16 %v73
    %v138 = vunpack.c.l.b16 %v74
    %v139 = vunpack.c.l.b16 %v75
    %v140 = vunpack.c.l.b16 %v76
    %v141 = vunpack.c.l.b16 %v77
    %v142 = vpack.c.b16 %v111, %v110
    %v143 = vpack.c.b16 %v113, %v112
    %v144 = vpack.c.b16 %v115, %v114
    %v145 = vpack.c.b16 %v117, %v116
    %v146 = vpack.c.b16 %v119, %v118
    %v147 = vpack.c.b16 %v121, %v120
    %v148 = vpack.c.b16 %v123, %v122
    %v149 = vpack.c.b16 %v125, %v124
    %v150 = vpack.c.b16 %v127, %v126
    %v151 = vpack.c.b16 %v129, %v128
    %v152 = vpack.c.b16 %v131, %v130
    %v153 = vpack.c.b16 %v133, %v132
    %v154 = vpack.c.b16 %v135, %v134
    %v155 = vpack.c.b16 %v137, %v136
    %v156 = vpack.c.b16 %v139, %v138
    %v157 = vpack.c.b16 %v141, %v140
    %174 = vmatpush.bf16.msra.mxu0 %v149
    %175 = vmatpush.bf16.msra.mxu0 %v148
    %176 = vmatpush.bf16.msra.mxu0 %v147
    %177 = vmatpush.bf16.msra.mxu0 %v146
    %178 = vmatpush.bf16.msra.mxu0 %v145
    %179 = vmatpush.bf16.msra.mxu0 %v144
    %180 = vmatpush.bf16.msra.mxu0 %v143
    %181 = vmatpush.bf16.msra.mxu0 %v142
    %182 = vmatmul.bf16.gmra.mxu0 %v44
    %v183 = vpop.f32.mrf.mxu0
    %v184 = vadd.f32 0.0, %v183
    %v185 = vpop.f32.mrf.mxu0
    %186 = vdwg.mxu0
    %187 = vmatpush.bf16.msra.mxu0 %v157
    %188 = vmatpush.bf16.msra.mxu0 %v156
    %189 = vmatpush.bf16.msra.mxu0 %v155
    %190 = vmatpush.bf16.msra.mxu0 %v154
    %191 = vmatpush.bf16.msra.mxu0 %v153
    %192 = vmatpush.bf16.msra.mxu0 %v152
    %193 = vmatpush.bf16.msra.mxu0 %v151
    %194 = vmatpush.bf16.msra.mxu0 %v150
    %195 = vmatmul.bf16.gmra.mxu0 %v45
    %v196 = vpop.f32.mrf.mxu0
    %v197 = vadd.f32 %v184, %v196
    %v198 = vpop.f32.mrf.mxu0
    %199 = vdwg.mxu0
    %200 = vst [vmem:[#allocation7] sm:$0xff] %v197
    // Predicated region
    $region18: #{tpu_custom_call.1} parent=1 // pred_check
      _
    $region19: #{tpu_custom_call.1} parent=1 // pred_check_branch
      %202 = sbr.rel (0) target = $region21
    $region20: #{tpu_custom_call.1} parent=1 // pred_region
      %204 = vsyncadd [#allocation4], 0
      %s206 = sshll.u32 [#allocation7], 4
      %s207 = int_to_ptr.vmem [resolvable:$true] %s206
      %s208 = sshll.u32 %s2, 4
      %s209 = int_to_ptr.hbm [resolvable:$true] %s208
      %211 = dma.vmem_to_hbm [thread:$0]  %s207, 128, %s209, [#allocation4]
    $region21: #{tpu_custom_call.1} parent=1 // pred_fallthru
      _
    // Predicated region
    $region22: #{tpu_custom_call.1} parent=1 // pred_check
      _
    $region23: #{tpu_custom_call.1} parent=1 // pred_check_branch
      %213 = sbr.rel (0) target = $region25
    $region24: #{tpu_custom_call.1} parent=1 // pred_region
      %215 = dma.done [#allocation4], 128
    $region25: #{tpu_custom_call.1} parent=1 // pred_fallthru
      _
    %216 = vsyncpa [#allocation3], 1
    %217 = vsyncpa [#allocation6], 1
    %218 = vsyncpa [#allocation4], 1

</llo_original>
